<compile_context>
chip_gen: v6e
topology: v6e:2x2x1
jax: 0.10.0
libtpu: 0.0.40
codegen_flags: <defaults>
</compile_context>

<pallas_src>
import jax
import jax.numpy as jnp
from jax.experimental import pallas as pl
from jax.experimental.pallas import tpu as pltpu


def _round_up(n, m):
    return ((n + m - 1) // m) * m


def _leaky_relu(h, slope=0.2):
    return jnp.where(h > 0, h, slope * h)


# ---------------------------------------------------------------------------
# Kernel: whole 4-layer MLP per batch tile, entirely in VMEM.
# ---------------------------------------------------------------------------
def generator_kernel(x_ref,
                     w1_ref, b1_ref,
                     w2_ref, b2_ref,
                     w3_ref, b3_ref,
                     w4_ref, b4_ref,
                     o_ref):
    wdt = w1_ref.dtype  # MXU operand dtype (f32 or bf16); accumulation is f32.

    h = jnp.dot(x_ref[...], w1_ref[...], preferred_element_type=jnp.float32)
    h = _leaky_relu(h + b1_ref[...].astype(jnp.float32))

    h = jnp.dot(h.astype(wdt), w2_ref[...], preferred_element_type=jnp.float32)
    h = _leaky_relu(h + b2_ref[...].astype(jnp.float32))

    h = jnp.dot(h.astype(wdt), w3_ref[...], preferred_element_type=jnp.float32)
    h = _leaky_relu(h + b3_ref[...].astype(jnp.float32))

    h = jnp.dot(h.astype(wdt), w4_ref[...], preferred_element_type=jnp.float32)
    h = h + b4_ref[...].astype(jnp.float32)
    o_ref[...] = jnp.tanh(h).astype(o_ref.dtype)


# ---------------------------------------------------------------------------
# One-time parameter preparation (hoisted out of the forward hot path).
# ---------------------------------------------------------------------------
def prepare_params(params, dtype=jnp.float32):
    """Cast weights/biases to the compute dtype and pad the final layer's
    output features to a lane multiple (128).  Call once, reuse every step."""
    out_dim = params["w4"].shape[1]
    out_p = _round_up(out_dim, 128)
    prepped = {}
    for li in range(1, 4):
        prepped[f"w{li}"] = params[f"w{li}"].astype(dtype)
        prepped[f"b{li}"] = params[f"b{li}"].astype(dtype)
    prepped["w4"] = jnp.pad(params["w4"].astype(dtype),
                            ((0, 0), (0, out_p - out_dim)))
    prepped["b4"] = jnp.pad(params["b4"].astype(dtype),
                            ((0, 0), (0, out_p - out_dim)))
    return prepped


# ---------------------------------------------------------------------------
# Block / grid heuristic (generation aware).
# ---------------------------------------------------------------------------
_MAX_ROWS_1TC = 2048   # v5e/v6e: single TC, big VMEM -> one big block.
_MAX_ROWS_2TC = 1024   # v7x: 64 MiB VMEM, 2 TCs -> smaller per-core block.

_NUM_TC_CACHE = None


def _num_tensorcores():
    global _NUM_TC_CACHE
    if _NUM_TC_CACHE is None:
        n = 1
        try:
            kind = jax.devices()[0].device_kind.lower()
            if "7" in kind:          # "tpu7x" / "tpu v7x": 2 TensorCores/chip
                n = 2
        except Exception:
            n = 1
        _NUM_TC_CACHE = n
    return _NUM_TC_CACHE


def _choose_block_b(B, num_tc):
    if num_tc >= 2 and B >= 16:
        # Even number of grid steps so both TensorCores get work.
        steps = 2 * pl.cdiv(B, 2 * _MAX_ROWS_2TC)
        return max(8, _round_up(pl.cdiv(B, steps), 8))
    # Single TC: grid is a serial loop -> one block if it fits VMEM.
    return max(8, _round_up(min(B, _MAX_ROWS_1TC), 8))


# ---------------------------------------------------------------------------
# Forward wrapper.
# ---------------------------------------------------------------------------
def generator_forward(x, prepped, *, block_b=None):
    """x: (B, input_dim).  prepped: output of prepare_params().

    Returns a lane-dense (B, out_p) slab (out_p = round_up(out_dim, 128));
    columns >= out_dim are padding produced by zero weight columns."""
    B, in_dim = x.shape
    w1, b1 = prepped["w1"], prepped["b1"]
    w2, b2 = prepped["w2"], prepped["b2"]
    w3, b3 = prepped["w3"], prepped["b3"]
    w4, b4 = prepped["w4"], prepped["b4"]
    wdtype = w1.dtype
    w_isize = jnp.dtype(wdtype).itemsize
    out_p = w4.shape[1]
    out_dtype = wdtype          # bf16 out when bf16 weights; f32 otherwise.

    if block_b is None:
        block_b = _choose_block_b(B, _num_tensorcores())
    block_b = max(8, _round_up(block_b, 8))
    B_p = _round_up(B, block_b)
    grid = (B_p // block_b,)

    # Only the batch dim is padded; x is streamed in the weight dtype.
    xp = x.astype(wdtype)
    if B_p != B:
        xp = jnp.pad(xp, ((0, B_p - B), (0, 0)))

    weight_bytes = sum(a.size * a.dtype.itemsize
                       for a in (w1, b1, w2, b2, w3, b3, w4, b4))

    # Advisory cost estimate so XLA schedules around the call.
    flops = 2 * B_p * (in_dim * 128 + 128 * 256 + 256 * 512 + 512 * out_p)
    bytes_accessed = (xp.size * xp.dtype.itemsize
                      + B_p * out_p * jnp.dtype(out_dtype).itemsize
                      + weight_bytes)
    cost = pl.CostEstimate(flops=int(flops),
                           transcendentals=int(B_p * out_p),
                           bytes_accessed=int(bytes_accessed))

    # VMEM budget: double-buffered x/out tiles, 2x weight buffers (constant
    # index map -> no re-DMA, but buffers are still reserved), f32
    # intermediates + bf16 downcast copies.
    per_step = (2 * block_b * in_dim * w_isize
                + 2 * block_b * out_p * jnp.dtype(out_dtype).itemsize
                + 2 * weight_bytes
                + block_b * (128 + 256 + 512) * 4
                + block_b * 512 * w_isize)
    vmem_limit = int(min(48 * 2**20, max(32 * 2**20, 2 * per_step)))

    # Weights/biases fully VMEM-resident (constant index map).
    full = lambda a: pl.BlockSpec(a.shape, lambda i: (0,) * a.ndim)

    out = pl.pallas_call(
        generator_kernel,
        out_shape=jax.ShapeDtypeStruct((B_p, out_p), out_dtype),
        grid_spec=pltpu.PrefetchScalarGridSpec(
            num_scalar_prefetch=0,
            grid=grid,
            in_specs=[
                pl.BlockSpec((block_b, in_dim), lambda i: (i, 0)),
                full(w1), full(b1),
                full(w2), full(b2),
                full(w3), full(b3),
                full(w4), full(b4),
            ],
            out_specs=pl.BlockSpec((block_b, out_p), lambda i: (i, 0)),
        ),
        compiler_params=pltpu.CompilerParams(
            dimension_semantics=("parallel",),
            vmem_limit_bytes=vmem_limit),
        cost_estimate=cost,
    )(xp, w1, b1, w2, b2, w3, b3, w4, b4)

    # Row slice only (no-op when B_p == B); keep the lane-dense column slab.
    return out[:B]


# ---------------------------------------------------------------------------
# Params + pure-JAX reference (same dtype discipline as the kernel).
# ---------------------------------------------------------------------------
def init_params(key, input_dim, output_dim):
    """Deterministic synthetic params (same shapes as the PyTorch module,
    weights stored (in_features, out_features))."""
    dims = [input_dim, 128, 256, 512, output_dim]
    params = {}
    for li, (d_in, d_out) in enumerate(zip(dims[:-1], dims[1:]), start=1):
        key, kw, kb = jax.random.split(key, 3)
        bound = 1.0 / jnp.sqrt(d_in)  # mimic nn.Linear default init range
        params[f"w{li}"] = jax.random.uniform(
            kw, (d_in, d_out), jnp.float32, -bound, bound)
        params[f"b{li}"] = jax.random.uniform(
            kb, (1, d_out), jnp.float32, -bound, bound)
    return params


def reference_forward(x, params, wdt=jnp.float32):
    """Same dtype discipline as the kernel: operands in `wdt`, f32
    accumulation, f32 elementwise, downcast between layers."""
    h = x.astype(wdt)
    for li in range(1, 4):
        h = jnp.dot(h, params[f"w{li}"].astype(wdt),
                    preferred_element_type=jnp.float32)
        h = h + params[f"b{li}"].astype(jnp.float32)
        h = jnp.where(h > 0, h, 0.2 * h).astype(wdt)
    h = jnp.dot(h, params["w4"].astype(wdt),
                preferred_element_type=jnp.float32)
    h = h + params["b4"].astype(jnp.float32)
    return jnp.tanh(h)


if __name__ == "__main__":
    key = jax.random.PRNGKey(0)
    key, kx, kp = jax.random.split(key, 3)

    input_dim = 32     # latent z dim
    output_dim = 64    # generated sample dim
    params = init_params(kp, input_dim, output_dim)

    # --- Test 1: toy batch (matches original module usage), f32 params.
    prepped_f32 = prepare_params(params, jnp.float32)
    x = jax.random.normal(kx, (8, input_dim), jnp.float32)
    out = jax.block_until_ready(generator_forward(x, prepped_f32))
    ref = reference_forward(x, params, jnp.float32)
    assert out.shape[0] == 8 and out.shape[1] >= output_dim
    assert jnp.allclose(out[:, :output_dim], ref, atol=1e-5, rtol=1e-5)

    # --- Test 2: ragged batch, multi-step parallel grid, bf16 weights/IO
    #             (f32 accumulation), lane-dense padded output.
    key, kx2 = jax.random.split(key)
    x2 = jax.random.normal(kx2, (200, input_dim), jnp.float32)
    prepped_bf16 = prepare_params(params, jnp.bfloat16)
    out2 = jax.block_until_ready(
        generator_forward(x2, prepped_bf16, block_b=64))
    ref2 = reference_forward(x2, params, jnp.bfloat16)
    assert out2.shape[0] == 200
    assert jnp.allclose(out2[:, :output_dim].astype(jnp.float32),
                        ref2.astype(jnp.float32), atol=3e-2, rtol=3e-2)

    # --- Test 3: auto block heuristic on a larger batch (exercises the
    #             generation-aware grid choice end to end).
    key, kx3 = jax.random.split(key)
    x3 = jax.random.normal(kx3, (300, input_dim), jnp.float32)
    out3 = jax.block_until_ready(generator_forward(x3, prepped_f32))
    ref3 = reference_forward(x3, params, jnp.float32)
    assert out3.shape[0] == 300
    assert jnp.allclose(out3[:, :output_dim], ref3, atol=1e-5, rtol=1e-5)

    print("KERNEL_OK")
</pallas_src>

<mosaic_0001>
module attributes {stable_mosaic.version = 11 : i64} {
  func.func @generator_kernel(%arg0: i32, %arg1: memref<8x32xf32, #tpu.memory_space<vmem>>, %arg2: memref<32x128xf32, #tpu.memory_space<vmem>>, %arg3: memref<1x128xf32, #tpu.memory_space<vmem>>, %arg4: memref<128x256xf32, #tpu.memory_space<vmem>>, %arg5: memref<1x256xf32, #tpu.memory_space<vmem>>, %arg6: memref<256x512xf32, #tpu.memory_space<vmem>>, %arg7: memref<1x512xf32, #tpu.memory_space<vmem>>, %arg8: memref<512x128xf32, #tpu.memory_space<vmem>>, %arg9: memref<1x128xf32, #tpu.memory_space<vmem>>, %arg10: memref<8x128xf32, #tpu.memory_space<vmem>>) attributes {dimension_semantics = [#tpu.dimension_semantics<parallel>], iteration_bounds = array<i64: 1>, scalar_prefetch = 0 : i64, scratch_operands = 0 : i64, tpu.core_type = #tpu.core_type<tc>, window_params = [{transform_indices = @transform_0, window_bounds = array<i64: 8, 32>}, {pipeline_mode = #tpu.pipeline_mode<synchronous>, transform_indices = @transform_1, window_bounds = array<i64: 32, 128>}, {pipeline_mode = #tpu.pipeline_mode<synchronous>, transform_indices = @transform_2, window_bounds = array<i64: 1, 128>}, {pipeline_mode = #tpu.pipeline_mode<synchronous>, transform_indices = @transform_3, window_bounds = array<i64: 128, 256>}, {pipeline_mode = #tpu.pipeline_mode<synchronous>, transform_indices = @transform_4, window_bounds = array<i64: 1, 256>}, {pipeline_mode = #tpu.pipeline_mode<synchronous>, transform_indices = @transform_5, window_bounds = array<i64: 256, 512>}, {pipeline_mode = #tpu.pipeline_mode<synchronous>, transform_indices = @transform_6, window_bounds = array<i64: 1, 512>}, {pipeline_mode = #tpu.pipeline_mode<synchronous>, transform_indices = @transform_7, window_bounds = array<i64: 512, 128>}, {pipeline_mode = #tpu.pipeline_mode<synchronous>, transform_indices = @transform_8, window_bounds = array<i64: 1, 128>}, {transform_indices = @transform_9, window_bounds = array<i64: 8, 128>}]} {
    %c0 = arith.constant 0 : index
    %c0_0 = arith.constant 0 : index
    %0 = vector.load %arg1[%c0, %c0_0] : memref<8x32xf32, #tpu.memory_space<vmem>>, vector<8x32xf32>
    %c0_1 = arith.constant 0 : index
    %c0_2 = arith.constant 0 : index
    %1 = vector.load %arg2[%c0_1, %c0_2] : memref<32x128xf32, #tpu.memory_space<vmem>>, vector<32x128xf32>
    %cst = arith.constant dense<0.000000e+00> : vector<8x128xf32>
    %2 = tpu.matmul %0, %1, %cst {dimension_numbers = #tpu.dot_dimension_numbers<[1], [0], [0], [1], [0, 0, 1, 1], [], []>} : vector<8x32xf32>, vector<32x128xf32>, vector<8x128xf32> -> vector<8x128xf32>
    %c0_3 = arith.constant 0 : index
    %c0_4 = arith.constant 0 : index
    %3 = vector.load %arg3[%c0_3, %c0_4] : memref<1x128xf32, #tpu.memory_space<vmem>>, vector<1x128xf32>
    %4 = vector.broadcast %3 : vector<1x128xf32> to vector<8x128xf32>
    %5 = arith.addf %2, %4 : vector<8x128xf32>
    %cst_5 = arith.constant 0.000000e+00 : f32
    %6 = vector.broadcast %cst_5 : f32 to vector<8x128xf32>
    %7 = arith.cmpf ogt, %5, %6 : vector<8x128xf32>
    %cst_6 = arith.constant 2.000000e-01 : f32
    %8 = vector.broadcast %cst_6 : f32 to vector<8x128xf32>
    %9 = arith.mulf %8, %5 : vector<8x128xf32>
    %10 = arith.select %7, %5, %9 : vector<8x128xi1>, vector<8x128xf32>
    %c0_7 = arith.constant 0 : index
    %c0_8 = arith.constant 0 : index
    %11 = vector.load %arg4[%c0_7, %c0_8] : memref<128x256xf32, #tpu.memory_space<vmem>>, vector<128x256xf32>
    %cst_9 = arith.constant dense<0.000000e+00> : vector<8x256xf32>
    %12 = tpu.matmul %10, %11, %cst_9 {dimension_numbers = #tpu.dot_dimension_numbers<[1], [0], [0], [1], [0, 0, 1, 1], [], []>} : vector<8x128xf32>, vector<128x256xf32>, vector<8x256xf32> -> vector<8x256xf32>
    %c0_10 = arith.constant 0 : index
    %c0_11 = arith.constant 0 : index
    %13 = vector.load %arg5[%c0_10, %c0_11] : memref<1x256xf32, #tpu.memory_space<vmem>>, vector<1x256xf32>
    %14 = vector.broadcast %13 : vector<1x256xf32> to vector<8x256xf32>
    %15 = arith.addf %12, %14 : vector<8x256xf32>
    %cst_12 = arith.constant 0.000000e+00 : f32
    %16 = vector.broadcast %cst_12 : f32 to vector<8x256xf32>
    %17 = arith.cmpf ogt, %15, %16 : vector<8x256xf32>
    %cst_13 = arith.constant 2.000000e-01 : f32
    %18 = vector.broadcast %cst_13 : f32 to vector<8x256xf32>
    %19 = arith.mulf %18, %15 : vector<8x256xf32>
    %20 = arith.select %17, %15, %19 : vector<8x256xi1>, vector<8x256xf32>
    %c0_14 = arith.constant 0 : index
    %c0_15 = arith.constant 0 : index
    %21 = vector.load %arg6[%c0_14, %c0_15] : memref<256x512xf32, #tpu.memory_space<vmem>>, vector<256x512xf32>
    %cst_16 = arith.constant dense<0.000000e+00> : vector<8x512xf32>
    %22 = tpu.matmul %20, %21, %cst_16 {dimension_numbers = #tpu.dot_dimension_numbers<[1], [0], [0], [1], [0, 0, 1, 1], [], []>} : vector<8x256xf32>, vector<256x512xf32>, vector<8x512xf32> -> vector<8x512xf32>
    %c0_17 = arith.constant 0 : index
    %c0_18 = arith.constant 0 : index
    %23 = vector.load %arg7[%c0_17, %c0_18] : memref<1x512xf32, #tpu.memory_space<vmem>>, vector<1x512xf32>
    %24 = vector.broadcast %23 : vector<1x512xf32> to vector<8x512xf32>
    %25 = arith.addf %22, %24 : vector<8x512xf32>
    %cst_19 = arith.constant 0.000000e+00 : f32
    %26 = vector.broadcast %cst_19 : f32 to vector<8x512xf32>
    %27 = arith.cmpf ogt, %25, %26 : vector<8x512xf32>
    %cst_20 = arith.constant 2.000000e-01 : f32
    %28 = vector.broadcast %cst_20 : f32 to vector<8x512xf32>
    %29 = arith.mulf %28, %25 : vector<8x512xf32>
    %30 = arith.select %27, %25, %29 : vector<8x512xi1>, vector<8x512xf32>
    %c0_21 = arith.constant 0 : index
    %c0_22 = arith.constant 0 : index
    %31 = vector.load %arg8[%c0_21, %c0_22] : memref<512x128xf32, #tpu.memory_space<vmem>>, vector<512x128xf32>
    %cst_23 = arith.constant dense<0.000000e+00> : vector<8x128xf32>
    %32 = tpu.matmul %30, %31, %cst_23 {dimension_numbers = #tpu.dot_dimension_numbers<[1], [0], [0], [1], [0, 0, 1, 1], [], []>} : vector<8x512xf32>, vector<512x128xf32>, vector<8x128xf32> -> vector<8x128xf32>
    %c0_24 = arith.constant 0 : index
    %c0_25 = arith.constant 0 : index
    %33 = vector.load %arg9[%c0_24, %c0_25] : memref<1x128xf32, #tpu.memory_space<vmem>>, vector<1x128xf32>
    %34 = vector.broadcast %33 : vector<1x128xf32> to vector<8x128xf32>
    %35 = arith.addf %32, %34 : vector<8x128xf32>
    %36 = math.tanh %35 : vector<8x128xf32>
    %c0_26 = arith.constant 0 : index
    %c0_27 = arith.constant 0 : index
    %37 = vector.load %arg10[%c0_26, %c0_27] : memref<8x128xf32, #tpu.memory_space<vmem>>, vector<8x128xf32>
    tpu.vector_store %arg10[%c0_26, %c0_27], %36 {strides = array<i32>} : memref<8x128xf32, #tpu.memory_space<vmem>>, vector<8x128xf32>,
    return
  }
  func.func @transform_0(%arg0: i32) -> (i32, i32) {
    %c0_i32 = arith.constant 0 : i32
    %c0_i32_0 = arith.constant 0 : i32
    return %arg0, %c0_i32 : i32, i32
  }
  func.func @transform_1(%arg0: i32) -> (i32, i32) {
    %c0_i32 = arith.constant 0 : i32
    %c0_i32_0 = arith.constant 0 : i32
    %c0_i32_1 = arith.constant 0 : i32
    return %c0_i32, %c0_i32_0 : i32, i32
  }
  func.func @transform_2(%arg0: i32) -> (i32, i32) {
    %c0_i32 = arith.constant 0 : i32
    %c0_i32_0 = arith.constant 0 : i32
    %c0_i32_1 = arith.constant 0 : i32
    return %c0_i32, %c0_i32_0 : i32, i32
  }
  func.func @transform_3(%arg0: i32) -> (i32, i32) {
    %c0_i32 = arith.constant 0 : i32
    %c0_i32_0 = arith.constant 0 : i32
    %c0_i32_1 = arith.constant 0 : i32
    return %c0_i32, %c0_i32_0 : i32, i32
  }
  func.func @transform_4(%arg0: i32) -> (i32, i32) {
    %c0_i32 = arith.constant 0 : i32
    %c0_i32_0 = arith.constant 0 : i32
    %c0_i32_1 = arith.constant 0 : i32
    return %c0_i32, %c0_i32_0 : i32, i32
  }
  func.func @transform_5(%arg0: i32) -> (i32, i32) {
    %c0_i32 = arith.constant 0 : i32
    %c0_i32_0 = arith.constant 0 : i32
    %c0_i32_1 = arith.constant 0 : i32
    return %c0_i32, %c0_i32_0 : i32, i32
  }
  func.func @transform_6(%arg0: i32) -> (i32, i32) {
    %c0_i32 = arith.constant 0 : i32
    %c0_i32_0 = arith.constant 0 : i32
    %c0_i32_1 = arith.constant 0 : i32
    return %c0_i32, %c0_i32_0 : i32, i32
  }
  func.func @transform_7(%arg0: i32) -> (i32, i32) {
    %c0_i32 = arith.constant 0 : i32
    %c0_i32_0 = arith.constant 0 : i32
    %c0_i32_1 = arith.constant 0 : i32
    return %c0_i32, %c0_i32_0 : i32, i32
  }
  func.func @transform_8(%arg0: i32) -> (i32, i32) {
    %c0_i32 = arith.constant 0 : i32
    %c0_i32_0 = arith.constant 0 : i32
    %c0_i32_1 = arith.constant 0 : i32
    return %c0_i32, %c0_i32_0 : i32, i32
  }
  func.func @transform_9(%arg0: i32) -> (i32, i32) {
    %c0_i32 = arith.constant 0 : i32
    %c0_i32_0 = arith.constant 0 : i32
    return %arg0, %c0_i32 : i32, i32
  }
}

</mosaic_0001>

<llo_original>
// kernel: tpu_custom_call.1
$region0: #{tpu_custom_call.1}
  #allocation0 [shape = 'u32[]', space=smem, size = 0x4, offset = 0x4, fixed_abs, tag = 'smem constant byte address 0x4 - core index']
  #allocation1 [shape = 'u32[144,128]{1,0:T(1,128)}', space=vmem, size = 0x12000, scoped, tag = 'internal scratch']
  %s0 = inlined_call_operand.hbm [shape: f32[8,32], index: 0, kind: input, shape index: {}]
  %s1 = inlined_call_operand.hbm [shape: f32[32,128], index: 1, kind: input, shape index: {}]
  %s2 = inlined_call_operand.vmem [shape: f32[1,128], index: 2, kind: input, shape index: {}]
  %s3 = inlined_call_operand.hbm [shape: f32[128,256], index: 3, kind: input, shape index: {}]
  %s4 = inlined_call_operand.vmem [shape: f32[1,256], index: 4, kind: input, shape index: {}]
  %s5 = inlined_call_operand.hbm [shape: f32[256,512], index: 5, kind: input, shape index: {}]
  %s6 = inlined_call_operand.vmem [shape: f32[1,512], index: 6, kind: input, shape index: {}]
  %s7 = inlined_call_operand.hbm [shape: f32[512,128], index: 7, kind: input, shape index: {}]
  %s8 = inlined_call_operand.vmem [shape: f32[1,128], index: 8, kind: input, shape index: {}]
  %s9 = inlined_call_operand.hbm [shape: f32[8,128], index: 9, kind: output, shape index: {}]
  %s10 = sld [smem:[#allocation0]]
  $region66: #{tpu_custom_call.1} parent=0
    _
  %s12 = ssub.s32 1, %s10
  %s13 = scalar_select 0, %s12, %s10
  $region1: #{tpu_custom_call.1} parent=0
    #allocation2 [shape = 'u8[4096]{0}', space=vmem, size = 0x1000, scoped, tag = 'input window, operand 0, single buffered']
    #allocation3 [shape = 's32[1]{0}', space=sflag, size = 0x4, scoped, tag = 'scoped memory for tpu_custom_call.1']
    #allocation4 [shape = 's32[1]{0}', space=sflag, size = 0x4, scoped, tag = 'scoped memory for tpu_custom_call.1']
    #allocation5 [shape = 'u8[16384]{0}', space=vmem, size = 0x4000, scoped, tag = 'input window, operand 1, single buffered']
    #allocation6 [shape = 's32[1]{0}', space=sflag, size = 0x4, scoped, tag = 'scoped memory for tpu_custom_call.1']
    #allocation7 [shape = 'u8[131072]{0}', space=vmem, size = 0x20000, scoped, tag = 'input window, operand 3, single buffered']
    #allocation8 [shape = 'u8[524288]{0}', space=vmem, size = 0x80000, scoped, tag = 'input window, operand 5, single buffered']
    #allocation9 [shape = 's32[1]{0}', space=sflag, size = 0x4, scoped, tag = 'scoped memory for tpu_custom_call.1']
    #allocation10 [shape = 'u8[262144]{0}', space=vmem, size = 0x40000, scoped, tag = 'input window, operand 7, single buffered']
    #allocation11 [shape = 'u8[4096]{0}', space=vmem, size = 0x1000, scoped, tag = 'output window, operand 0, single buffered']
    %14 = vsyncpa [#allocation3], 0
    %15 = vsyncpa [#allocation6], 0
    %16 = vsyncpa [#allocation9], 0
    %17 = vsyncpa [#allocation4], 0
    // Predicated region
    $region2: #{tpu_custom_call.1} parent=1 // pred_check
      _
    $region3: #{tpu_custom_call.1} parent=1 // pred_check_branch
      %19 = sbr.rel (0) target = $region5
    $region4: #{tpu_custom_call.1} parent=1 // pred_region
      %s21 = ssub.s32 128, 128
      %22 = vsyncadd [#allocation3], %s21
      %s24 = sshll.u32 [#allocation2], 4
      %s25 = int_to_ptr.vmem [resolvable:$true] %s24
      %27 = dma.hbm_to_vmem [thread:$0]  %s0, 128, %s25, [#allocation3]
    $region5: #{tpu_custom_call.1} parent=1 // pred_fallthru
      _
    // Predicated region
    $region6: #{tpu_custom_call.1} parent=1 // pred_check
      _
    $region7: #{tpu_custom_call.1} parent=1 // pred_check_branch
      %29 = sbr.rel (0) target = $region9
    $region8: #{tpu_custom_call.1} parent=1 // pred_region
      %s31 = ssub.s32 512, 512
      %32 = vsyncadd [#allocation6], %s31
      %s33 = sshll.u32 [#allocation5], 4
      %s34 = int_to_ptr.vmem [resolvable:$true] %s33
      %39 = dma.hbm_to_vmem [thread:$0]  %s1, 512, %s34, [#allocation6], 128, 128, 8
    $region9: #{tpu_custom_call.1} parent=1 // pred_fallthru
      _
    // Predicated region
    $region10: #{tpu_custom_call.1} parent=1 // pred_check
      _
    $region11: #{tpu_custom_call.1} parent=1 // pred_check_branch
      %41 = sbr.rel (0) target = $region13
    $region12: #{tpu_custom_call.1} parent=1 // pred_region
      _
    $region13: #{tpu_custom_call.1} parent=1 // pred_fallthru
      _
    // Predicated region
    $region14: #{tpu_custom_call.1} parent=1 // pred_check
      _
    $region15: #{tpu_custom_call.1} parent=1 // pred_check_branch
      %43 = sbr.rel (0) target = $region17
    $region16: #{tpu_custom_call.1} parent=1 // pred_region
      %s45 = ssub.s32 4096, 4096
      %46 = vsyncadd [#allocation6], %s45
      %s47 = sshll.u32 [#allocation7], 4
      %s48 = int_to_ptr.vmem [resolvable:$true] %s47
      %53 = dma.hbm_to_vmem [thread:$0]  %s3, 4096, %s48, [#allocation6], 256, 256, 16
    $region17: #{tpu_custom_call.1} parent=1 // pred_fallthru
      _
    // Predicated region
    $region18: #{tpu_custom_call.1} parent=1 // pred_check
      _
    $region19: #{tpu_custom_call.1} parent=1 // pred_check_branch
      %55 = sbr.rel (0) target = $region21
    $region20: #{tpu_custom_call.1} parent=1 // pred_region
      _
    $region21: #{tpu_custom_call.1} parent=1 // pred_fallthru
      _
    // Predicated region
    $region22: #{tpu_custom_call.1} parent=1 // pred_check
      _
    $region23: #{tpu_custom_call.1} parent=1 // pred_check_branch
      %57 = sbr.rel (0) target = $region25
    $region24: #{tpu_custom_call.1} parent=1 // pred_region
      %s59 = ssub.s32 16384, 16384
      %60 = vsyncadd [#allocation9], %s59
      %s61 = sshll.u32 [#allocation8], 4
      %s62 = int_to_ptr.vmem [resolvable:$true] %s61
      %67 = dma.hbm_to_vmem [thread:$0]  %s5, 16384, %s62, [#allocation9], 512, 512, 32
    $region25: #{tpu_custom_call.1} parent=1 // pred_fallthru
      _
    // Predicated region
    $region26: #{tpu_custom_call.1} parent=1 // pred_check
      _
    $region27: #{tpu_custom_call.1} parent=1 // pred_check_branch
      %69 = sbr.rel (0) target = $region29
    $region28: #{tpu_custom_call.1} parent=1 // pred_region
      _
    $region29: #{tpu_custom_call.1} parent=1 // pred_fallthru
      _
    // Predicated region
    $region30: #{tpu_custom_call.1} parent=1 // pred_check
      _
    $region31: #{tpu_custom_call.1} parent=1 // pred_check_branch
      %71 = sbr.rel (0) target = $region33
    $region32: #{tpu_custom_call.1} parent=1 // pred_region
      %s73 = ssub.s32 8192, 8192
      %74 = vsyncadd [#allocation9], %s73
      %s75 = sshll.u32 [#allocation10], 4
      %s76 = int_to_ptr.vmem [resolvable:$true] %s75
      %81 = dma.hbm_to_vmem [thread:$0]  %s7, 8192, %s76, [#allocation9], 128, 128, 8
    $region33: #{tpu_custom_call.1} parent=1 // pred_fallthru
      _
    // Predicated region
    $region34: #{tpu_custom_call.1} parent=1 // pred_check
      _
    $region35: #{tpu_custom_call.1} parent=1 // pred_check_branch
      %83 = sbr.rel (0) target = $region37
    $region36: #{tpu_custom_call.1} parent=1 // pred_region
      _
    $region37: #{tpu_custom_call.1} parent=1 // pred_fallthru
      _
    // Predicated region
    $region38: #{tpu_custom_call.1} parent=1 // pred_check
      _
    $region39: #{tpu_custom_call.1} parent=1 // pred_check_branch
      %85 = sbr.rel (0) target = $region41
    $region40: #{tpu_custom_call.1} parent=1 // pred_region
      %86 = dma.done [#allocation3], 128
    $region41: #{tpu_custom_call.1} parent=1 // pred_fallthru
      _
    // Predicated region
    $region42: #{tpu_custom_call.1} parent=1 // pred_check
      _
    $region43: #{tpu_custom_call.1} parent=1 // pred_check_branch
      %88 = sbr.rel (0) target = $region45
    $region44: #{tpu_custom_call.1} parent=1 // pred_region
      %89 = dma.done [#allocation6], 512
    $region45: #{tpu_custom_call.1} parent=1 // pred_fallthru
      _
    // Predicated region
    $region46: #{tpu_custom_call.1} parent=1 // pred_check
      _
    $region47: #{tpu_custom_call.1} parent=1 // pred_check_branch
      %91 = sbr.rel (0) target = $region49
    $region48: #{tpu_custom_call.1} parent=1 // pred_region
      %92 = dma.done [#allocation6], 4096
    $region49: #{tpu_custom_call.1} parent=1 // pred_fallthru
      _
    // Predicated region
    $region50: #{tpu_custom_call.1} parent=1 // pred_check
      _
    $region51: #{tpu_custom_call.1} parent=1 // pred_check_branch
      %94 = sbr.rel (0) target = $region53
    $region52: #{tpu_custom_call.1} parent=1 // pred_region
      %95 = dma.done [#allocation9], 16384
    $region53: #{tpu_custom_call.1} parent=1 // pred_fallthru
      _
    // Predicated region
    $region54: #{tpu_custom_call.1} parent=1 // pred_check
      _
    $region55: #{tpu_custom_call.1} parent=1 // pred_check_branch
      %97 = sbr.rel (0) target = $region57
    $region56: #{tpu_custom_call.1} parent=1 // pred_region
      %98 = dma.done [#allocation9], 8192
    $region57: #{tpu_custom_call.1} parent=1 // pred_fallthru
      _
    %v99 = vld [vmem:[#allocation2] sm:$0xff]
    %v100 = vld [vmem:[#allocation5] sm:$0xff]
    %v101 = vld [vmem:[#allocation5 + $0x8] sm:$0xff]
    %v102 = vld [vmem:[#allocation5 + $0x10] sm:$0xff]
    %v103 = vld [vmem:[#allocation5 + $0x18] sm:$0xff]
    %v104 = vld [vmem:[%s2] sm:$0x1]
    %v106 = vlaneseq
    %v107 = vshrl.u32 %v106, 7
    %v108 = vsub.s32 0, %v107
    %v109 = vrot.slane %v104, %v108
    %vm111 = vcmask 261120
    %v113 = vsel %vm111, %v99, 0
    %115 = vmatprep.subr.mxu0 0.0
    %116 = vmatpush1.msra.mxu0 0.0
    %117 = vmatprep.subr.mxu0 0.0
    %118 = vmatpush1.msra.mxu0 0.0
    %119 = vmatprep.subr.mxu0 0.0
    %120 = vmatpush1.msra.mxu0 0.0
    %121 = vmatprep.subr.mxu0 0.0
    %122 = vmatpush1.msra.mxu0 0.0
    %123 = vmatprep.subr.mxu0 0.0
    %124 = vmatpush1.msra.mxu0 0.0
    %125 = vmatprep.subr.mxu0 0.0
    %126 = vmatpush1.msra.mxu0 0.0
    %127 = vmatprep.subr.mxu0 0.0
    %128 = vmatpush1.msra.mxu0 0.0
    %129 = vmatprep.subr.mxu0 0.0
    %130 = vmatpush1.msra.mxu0 0.0
    %131 = vmatprep.subr.mxu0 0.0
    %132 = vmatpush1.msra.mxu0 0.0
    %133 = vmatprep.subr.mxu0 0.0
    %134 = vmatpush1.msra.mxu0 0.0
    %135 = vmatprep.subr.mxu0 0.0
    %136 = vmatpush1.msra.mxu0 0.0
    %137 = vmatprep.subr.mxu0 0.0
    %138 = vmatpush1.msra.mxu0 0.0
    %139 = vmatprep.subr.mxu0 0.0
    %140 = vmatpush1.msra.mxu0 %v103
    %141 = vmatprep.subr.mxu0 0.0
    %142 = vmatpush1.msra.mxu0 %v102
    %143 = vmatprep.subr.mxu0 0.0
    %144 = vmatpush1.msra.mxu0 %v101
    %145 = vmatprep.subr.mxu0 0.0
    %146 = vmatpush1.msra.mxu0 %v100
    %147 = vmatprep.subr.mxu0 0.0
    %148 = vmatpush2.msra.mxu0 0.0
    %149 = vmatprep.subr.mxu0 0.0
    %150 = vmatpush2.msra.mxu0 0.0
    %151 = vmatprep.subr.mxu0 0.0
    %152 = vmatpush2.msra.mxu0 0.0
    %153 = vmatprep.subr.mxu0 0.0
    %154 = vmatpush2.msra.mxu0 0.0
    %155 = vmatprep.subr.mxu0 0.0
    %156 = vmatpush2.msra.mxu0 0.0
    %157 = vmatprep.subr.mxu0 0.0
    %158 = vmatpush2.msra.mxu0 0.0
    %159 = vmatprep.subr.mxu0 0.0
    %160 = vmatpush2.msra.mxu0 0.0
    %161 = vmatprep.subr.mxu0 0.0
    %162 = vmatpush2.msra.mxu0 0.0
    %163 = vmatprep.subr.mxu0 0.0
    %164 = vmatpush2.msra.mxu0 0.0
    %165 = vmatprep.subr.mxu0 0.0
    %166 = vmatpush2.msra.mxu0 0.0
    %167 = vmatprep.subr.mxu0 0.0
    %168 = vmatpush2.msra.mxu0 0.0
    %169 = vmatprep.subr.mxu0 0.0
    %170 = vmatpush2.msra.mxu0 0.0
    %171 = vmatprep.subr.mxu0 0.0
    %172 = vmatpush2.msra.mxu0 0.0
    %173 = vmatprep.subr.mxu0 0.0
    %174 = vmatpush2.msra.mxu0 0.0
    %175 = vmatprep.subr.mxu0 0.0
    %176 = vmatpush2.msra.mxu0 0.0
    %177 = vmatprep.subr.mxu0 0.0
    %178 = vmatpush2.msra.mxu0 0.0
    %179 = vmatprep.mubr.f32.mxu0 0.0
    %180 = vmatmul.mubr.f32.gmra.mxu0 %v113
    %v181 = vpop.f32.mrf.mxu0
    %v182 = vadd.f32 %v109, %v181
    %v183 = vpop.f32.mrf.mxu0
    %184 = vdwg.mxu0
    %vm185 = vcmp.gt.f32.partialorder %v182, 0.0
    %v186 = vmul.f32 %v182, 0.2
    %v187 = vsel %vm185, %v182, %v186
    %v188 = vld [vmem:[#allocation7] sm:$0xff]
    %v189 = vld [vmem:[#allocation7 + $0x8] sm:$0xff]
    %v190 = vld [vmem:[#allocation7 + $0x10] sm:$0xff]
    %v191 = vld [vmem:[#allocation7 + $0x18] sm:$0xff]
    %v192 = vld [vmem:[#allocation7 + $0x20] sm:$0xff]
    %v193 = vld [vmem:[#allocation7 + $0x28] sm:$0xff]
    %v194 = vld [vmem:[#allocation7 + $0x30] sm:$0xff]
    %v195 = vld [vmem:[#allocation7 + $0x38] sm:$0xff]
    %v196 = vld [vmem:[#allocation7 + $0x40] sm:$0xff]
    %v197 = vld [vmem:[#allocation7 + $0x48] sm:$0xff]
    %v198 = vld [vmem:[#allocation7 + $0x50] sm:$0xff]
    %v199 = vld [vmem:[#allocation7 + $0x58] sm:$0xff]
    %v200 = vld [vmem:[#allocation7 + $0x60] sm:$0xff]
    %v201 = vld [vmem:[#allocation7 + $0x68] sm:$0xff]
    %v202 = vld [vmem:[#allocation7 + $0x70] sm:$0xff]
    %v203 = vld [vmem:[#allocation7 + $0x78] sm:$0xff]
    %v204 = vld [vmem:[#allocation7 + $0x80] sm:$0xff]
    %v205 = vld [vmem:[#allocation7 + $0x88] sm:$0xff]
    %v206 = vld [vmem:[#allocation7 + $0x90] sm:$0xff]
    %v207 = vld [vmem:[#allocation7 + $0x98] sm:$0xff]
    %v208 = vld [vmem:[#allocation7 + $0xa0] sm:$0xff]
    %v209 = vld [vmem:[#allocation7 + $0xa8] sm:$0xff]
    %v210 = vld [vmem:[#allocation7 + $0xb0] sm:$0xff]
    %v211 = vld [vmem:[#allocation7 + $0xb8] sm:$0xff]
    %v212 = vld [vmem:[#allocation7 + $0xc0] sm:$0xff]
    %v213 = vld [vmem:[#allocation7 + $0xc8] sm:$0xff]
    %v214 = vld [vmem:[#allocation7 + $0xd0] sm:$0xff]
    %v215 = vld [vmem:[#allocation7 + $0xd8] sm:$0xff]
    %v216 = vld [vmem:[#allocation7 + $0xe0] sm:$0xff]
    %v217 = vld [vmem:[#allocation7 + $0xe8] sm:$0xff]
    %v218 = vld [vmem:[#allocation7 + $0xf0] sm:$0xff]
    %v219 = vld [vmem:[#allocation7 + $0xf8] sm:$0xff]
    %v220 = vld [vmem:[%s4] sm:$0x3]
    %v222 = vlaneseq
    %v223 = vshrl.u32 %v222, 7
    %v224 = vsub.s32 0, %v223
    %v225 = vrot.slane %v220, %v224
    %v226 = vlaneseq
    %v227 = vshrl.u32 %v226, 7
    %v228 = vsub.s32 1, %v227
    %v229 = vrot.slane %v220, %v228
    %232 = vmatprep.subr.mxu0 %v219
    %233 = vmatpush1.msra.mxu0 %v218
    %234 = vmatprep.subr.mxu0 %v217
    %235 = vmatpush1.msra.mxu0 %v216
    %236 = vmatprep.subr.mxu0 %v215
    %237 = vmatpush1.msra.mxu0 %v214
    %238 = vmatprep.subr.mxu0 %v213
    %239 = vmatpush1.msra.mxu0 %v212
    %240 = vmatprep.subr.mxu0 %v211
    %241 = vmatpush1.msra.mxu0 %v210
    %242 = vmatprep.subr.mxu0 %v209
    %243 = vmatpush1.msra.mxu0 %v208
    %244 = vmatprep.subr.mxu0 %v207
    %245 = vmatpush1.msra.mxu0 %v206
    %246 = vmatprep.subr.mxu0 %v205
    %247 = vmatpush1.msra.mxu0 %v204
    %248 = vmatprep.subr.mxu0 %v203
    %249 = vmatpush1.msra.mxu0 %v202
    %250 = vmatprep.subr.mxu0 %v201
    %251 = vmatpush1.msra.mxu0 %v200
    %252 = vmatprep.subr.mxu0 %v199
    %253 = vmatpush1.msra.mxu0 %v198
    %254 = vmatprep.subr.mxu0 %v197
    %255 = vmatpush1.msra.mxu0 %v196
    %256 = vmatprep.subr.mxu0 %v195
    %257 = vmatpush1.msra.mxu0 %v194
    %258 = vmatprep.subr.mxu0 %v193
    %259 = vmatpush1.msra.mxu0 %v192
    %260 = vmatprep.subr.mxu0 %v191
    %261 = vmatpush1.msra.mxu0 %v190
    %262 = vmatprep.subr.mxu0 %v189
    %263 = vmatpush1.msra.mxu0 %v188
    %264 = vmatprep.subr.mxu0 0.0
    %265 = vmatpush2.msra.mxu0 0.0
    %266 = vmatprep.subr.mxu0 0.0
    %267 = vmatpush2.msra.mxu0 0.0
    %268 = vmatprep.subr.mxu0 0.0
    %269 = vmatpush2.msra.mxu0 0.0
    %270 = vmatprep.subr.mxu0 0.0
    %271 = vmatpush2.msra.mxu0 0.0
    %272 = vmatprep.subr.mxu0 0.0
    %273 = vmatpush2.msra.mxu0 0.0
    %274 = vmatprep.subr.mxu0 0.0
    %275 = vmatpush2.msra.mxu0 0.0
    %276 = vmatprep.subr.mxu0 0.0
    %277 = vmatpush2.msra.mxu0 0.0
    %278 = vmatprep.subr.mxu0 0.0
    %279 = vmatpush2.msra.mxu0 0.0
    %280 = vmatprep.subr.mxu0 0.0
    %281 = vmatpush2.msra.mxu0 0.0
    %282 = vmatprep.subr.mxu0 0.0
    %283 = vmatpush2.msra.mxu0 0.0
    %284 = vmatprep.subr.mxu0 0.0
    %285 = vmatpush2.msra.mxu0 0.0
    %286 = vmatprep.subr.mxu0 0.0
    %287 = vmatpush2.msra.mxu0 0.0
    %288 = vmatprep.subr.mxu0 0.0
    %289 = vmatpush2.msra.mxu0 0.0
    %290 = vmatprep.subr.mxu0 0.0
    %291 = vmatpush2.msra.mxu0 0.0
    %292 = vmatprep.subr.mxu0 0.0
    %293 = vmatpush2.msra.mxu0 0.0
    %294 = vmatprep.subr.mxu0 0.0
    %295 = vmatpush2.msra.mxu0 0.0
    %296 = vmatprep.mubr.f32.mxu0 0.0
    %297 = vmatmul.mubr.f32.gmra.mxu0 %v187
    %v298 = vpop.f32.mrf.mxu0
    %v299 = vadd.f32 %v225, %v298
    %v300 = vpop.f32.mrf.mxu0
    %v301 = vadd.f32 %v229, %v300
    %302 = vdwg.mxu0
    %vm303 = vcmp.gt.f32.partialorder %v299, 0.0
    %vm304 = vcmp.gt.f32.partialorder %v301, 0.0
    %v305 = vmul.f32 %v299, 0.2
    %v306 = vmul.f32 %v301, 0.2
    %v307 = vsel %vm303, %v299, %v305
    %v308 = vsel %vm304, %v301, %v306
    %v309 = vld [vmem:[#allocation8] sm:$0xff]
    %v310 = vld [vmem:[#allocation8 + $0x8] sm:$0xff]
    %v311 = vld [vmem:[#allocation8 + $0x10] sm:$0xff]
    %v312 = vld [vmem:[#allocation8 + $0x18] sm:$0xff]
    %v313 = vld [vmem:[#allocation8 + $0x20] sm:$0xff]
    %v314 = vld [vmem:[#allocation8 + $0x28] sm:$0xff]
    %v315 = vld [vmem:[#allocation8 + $0x30] sm:$0xff]
    %v316 = vld [vmem:[#allocation8 + $0x38] sm:$0xff]
    %v317 = vld [vmem:[#allocation8 + $0x40] sm:$0xff]
    %v318 = vld [vmem:[#allocation8 + $0x48] sm:$0xff]
    %v319 = vld [vmem:[#allocation8 + $0x50] sm:$0xff]
    %v320 = vld [vmem:[#allocation8 + $0x58] sm:$0xff]
    %v321 = vld [vmem:[#allocation8 + $0x60] sm:$0xff]
    %v322 = vld [vmem:[#allocation8 + $0x68] sm:$0xff]
    %v323 = vld [vmem:[#allocation8 + $0x70] sm:$0xff]
    %v324 = vld [vmem:[#allocation8 + $0x78] sm:$0xff]
    %v325 = vld [vmem:[#allocation8 + $0x80] sm:$0xff]
    %v326 = vld [vmem:[#allocation8 + $0x88] sm:$0xff]
    %v327 = vld [vmem:[#allocation8 + $0x90] sm:$0xff]
    %v328 = vld [vmem:[#allocation8 + $0x98] sm:$0xff]
    %v329 = vld [vmem:[#allocation8 + $0xa0] sm:$0xff]
    %v330 = vld [vmem:[#allocation8 + $0xa8] sm:$0xff]
    %v331 = vld [vmem:[#allocation8 + $0xb0] sm:$0xff]
    %v332 = vld [vmem:[#allocation8 + $0xb8] sm:$0xff]
    %v333 = vld [vmem:[#allocation8 + $0xc0] sm:$0xff]
    %v334 = vld [vmem:[#allocation8 + $0xc8] sm:$0xff]
    %v335 = vld [vmem:[#allocation8 + $0xd0] sm:$0xff]
    %v336 = vld [vmem:[#allocation8 + $0xd8] sm:$0xff]
    %v337 = vld [vmem:[#allocation8 + $0xe0] sm:$0xff]
    %v338 = vld [vmem:[#allocation8 + $0xe8] sm:$0xff]
    %v339 = vld [vmem:[#allocation8 + $0xf0] sm:$0xff]
    %v340 = vld [vmem:[#allocation8 + $0xf8] sm:$0xff]
    %v341 = vld [vmem:[#allocation8 + $0x100] sm:$0xff]
    %v342 = vld [vmem:[#allocation8 + $0x108] sm:$0xff]
    %v343 = vld [vmem:[#allocation8 + $0x110] sm:$0xff]
    %v344 = vld [vmem:[#allocation8 + $0x118] sm:$0xff]
    %v345 = vld [vmem:[#allocation8 + $0x120] sm:$0xff]
    %v346 = vld [vmem:[#allocation8 + $0x128] sm:$0xff]
    %v347 = vld [vmem:[#allocation8 + $0x130] sm:$0xff]
    %v348 = vld [vmem:[#allocation8 + $0x138] sm:$0xff]
    %v349 = vld [vmem:[#allocation8 + $0x140] sm:$0xff]
    %v350 = vld [vmem:[#allocation8 + $0x148] sm:$0xff]
    %v351 = vld [vmem:[#allocation8 + $0x150] sm:$0xff]
    %v352 = vld [vmem:[#allocation8 + $0x158] sm:$0xff]
    %v353 = vld [vmem:[#allocation8 + $0x160] sm:$0xff]
    %v354 = vld [vmem:[#allocation8 + $0x168] sm:$0xff]
    %v355 = vld [vmem:[#allocation8 + $0x170] sm:$0xff]
    %v356 = vld [vmem:[#allocation8 + $0x178] sm:$0xff]
    %v357 = vld [vmem:[#allocation8 + $0x180] sm:$0xff]
    %v358 = vld [vmem:[#allocation8 + $0x188] sm:$0xff]
    %v359 = vld [vmem:[#allocation8 + $0x190] sm:$0xff]
    %v360 = vld [vmem:[#allocation8 + $0x198] sm:$0xff]
    %v361 = vld [vmem:[#allocation8 + $0x1a0] sm:$0xff]
    %v362 = vld [vmem:[#allocation8 + $0x1a8] sm:$0xff]
    %v363 = vld [vmem:[#allocation8 + $0x1b0] sm:$0xff]
    %v364 = vld [vmem:[#allocation8 + $0x1b8] sm:$0xff]
    %v365 = vld [vmem:[#allocation8 + $0x1c0] sm:$0xff]
    %v366 = vld [vmem:[#allocation8 + $0x1c8] sm:$0xff]
    %v367 = vld [vmem:[#allocation8 + $0x1d0] sm:$0xff]
    %v368 = vld [vmem:[#allocation8 + $0x1d8] sm:$0xff]
    %v369 = vld [vmem:[#allocation8 + $0x1e0] sm:$0xff]
    %v370 = vld [vmem:[#allocation8 + $0x1e8] sm:$0xff]
    %v371 = vld [vmem:[#allocation8 + $0x1f0] sm:$0xff]
    %v372 = vld [vmem:[#allocation8 + $0x1f8] sm:$0xff]
    %v373 = vld [vmem:[#allocation8 + $0x200] sm:$0xff]
    %v374 = vld [vmem:[#allocation8 + $0x208] sm:$0xff]
    %v375 = vld [vmem:[#allocation8 + $0x210] sm:$0xff]
    %v376 = vld [vmem:[#allocation8 + $0x218] sm:$0xff]
    %v377 = vld [vmem:[#allocation8 + $0x220] sm:$0xff]
    %v378 = vld [vmem:[#allocation8 + $0x228] sm:$0xff]
    %v379 = vld [vmem:[#allocation8 + $0x230] sm:$0xff]
    %v380 = vld [vmem:[#allocation8 + $0x238] sm:$0xff]
    %v381 = vld [vmem:[#allocation8 + $0x240] sm:$0xff]
    %v382 = vld [vmem:[#allocation8 + $0x248] sm:$0xff]
    %v383 = vld [vmem:[#allocation8 + $0x250] sm:$0xff]
    %v384 = vld [vmem:[#allocation8 + $0x258] sm:$0xff]
    %v385 = vld [vmem:[#allocation8 + $0x260] sm:$0xff]
    %v386 = vld [vmem:[#allocation8 + $0x268] sm:$0xff]
    %v387 = vld [vmem:[#allocation8 + $0x270] sm:$0xff]
    %v388 = vld [vmem:[#allocation8 + $0x278] sm:$0xff]
    %v389 = vld [vmem:[#allocation8 + $0x280] sm:$0xff]
    %v390 = vld [vmem:[#allocation8 + $0x288] sm:$0xff]
    %v391 = vld [vmem:[#allocation8 + $0x290] sm:$0xff]
    %v392 = vld [vmem:[#allocation8 + $0x298] sm:$0xff]
    %v393 = vld [vmem:[#allocation8 + $0x2a0] sm:$0xff]
    %v394 = vld [vmem:[#allocation8 + $0x2a8] sm:$0xff]
    %v395 = vld [vmem:[#allocation8 + $0x2b0] sm:$0xff]
    %v396 = vld [vmem:[#allocation8 + $0x2b8] sm:$0xff]
    %v397 = vld [vmem:[#allocation8 + $0x2c0] sm:$0xff]
    %v398 = vld [vmem:[#allocation8 + $0x2c8] sm:$0xff]
    %v399 = vld [vmem:[#allocation8 + $0x2d0] sm:$0xff]
    %v400 = vld [vmem:[#allocation8 + $0x2d8] sm:$0xff]
    %v401 = vld [vmem:[#allocation8 + $0x2e0] sm:$0xff]
    %v402 = vld [vmem:[#allocation8 + $0x2e8] sm:$0xff]
    %v403 = vld [vmem:[#allocation8 + $0x2f0] sm:$0xff]
    %v404 = vld [vmem:[#allocation8 + $0x2f8] sm:$0xff]
    %v405 = vld [vmem:[#allocation8 + $0x300] sm:$0xff]
    %v406 = vld [vmem:[#allocation8 + $0x308] sm:$0xff]
    %v407 = vld [vmem:[#allocation8 + $0x310] sm:$0xff]
    %v408 = vld [vmem:[#allocation8 + $0x318] sm:$0xff]
    %v409 = vld [vmem:[#allocation8 + $0x320] sm:$0xff]
    %v410 = vld [vmem:[#allocation8 + $0x328] sm:$0xff]
    %v411 = vld [vmem:[#allocation8 + $0x330] sm:$0xff]
    %v412 = vld [vmem:[#allocation8 + $0x338] sm:$0xff]
    %v413 = vld [vmem:[#allocation8 + $0x340] sm:$0xff]
    %v414 = vld [vmem:[#allocation8 + $0x348] sm:$0xff]
    %v415 = vld [vmem:[#allocation8 + $0x350] sm:$0xff]
    %v416 = vld [vmem:[#allocation8 + $0x358] sm:$0xff]
    %v417 = vld [vmem:[#allocation8 + $0x360] sm:$0xff]
    %v418 = vld [vmem:[#allocation8 + $0x368] sm:$0xff]
    %v419 = vld [vmem:[#allocation8 + $0x370] sm:$0xff]
    %v420 = vld [vmem:[#allocation8 + $0x378] sm:$0xff]
    %v421 = vld [vmem:[#allocation8 + $0x380] sm:$0xff]
    %v422 = vld [vmem:[#allocation8 + $0x388] sm:$0xff]
    %v423 = vld [vmem:[#allocation8 + $0x390] sm:$0xff]
    %v424 = vld [vmem:[#allocation8 + $0x398] sm:$0xff]
    %v425 = vld [vmem:[#allocation8 + $0x3a0] sm:$0xff]
    %v426 = vld [vmem:[#allocation8 + $0x3a8] sm:$0xff]
    %v427 = vld [vmem:[#allocation8 + $0x3b0] sm:$0xff]
    %v428 = vld [vmem:[#allocation8 + $0x3b8] sm:$0xff]
    %v429 = vld [vmem:[#allocation8 + $0x3c0] sm:$0xff]
    %v430 = vld [vmem:[#allocation8 + $0x3c8] sm:$0xff]
    %v431 = vld [vmem:[#allocation8 + $0x3d0] sm:$0xff]
    %v432 = vld [vmem:[#allocation8 + $0x3d8] sm:$0xff]
    %v433 = vld [vmem:[#allocation8 + $0x3e0] sm:$0xff]
    %v434 = vld [vmem:[#allocation8 + $0x3e8] sm:$0xff]
    %v435 = vld [vmem:[#allocation8 + $0x3f0] sm:$0xff]
    %v436 = vld [vmem:[#allocation8 + $0x3f8] sm:$0xff]
    %v437 = vld [vmem:[%s6] sm:$0xf]
    %v439 = vlaneseq
    %v440 = vshrl.u32 %v439, 7
    %v441 = vsub.s32 0, %v440
    %v442 = vrot.slane %v437, %v441
    %v443 = vlaneseq
    %v444 = vshrl.u32 %v443, 7
    %v445 = vsub.s32 1, %v444
    %v446 = vrot.slane %v437, %v445
    %v447 = vlaneseq
    %v448 = vshrl.u32 %v447, 7
    %v449 = vsub.s32 2, %v448
    %v450 = vrot.slane %v437, %v449
    %v451 = vlaneseq
    %v452 = vshrl.u32 %v451, 7
    %v453 = vsub.s32 3, %v452
    %v454 = vrot.slane %v437, %v453
    %459 = vmatprep.subr.mxu0 %v370
    %460 = vmatpush1.msra.mxu0 %v369
    %461 = vmatprep.subr.mxu0 %v366
    %462 = vmatpush1.msra.mxu0 %v365
    %463 = vmatprep.subr.mxu0 %v362
    %464 = vmatpush1.msra.mxu0 %v361
    %465 = vmatprep.subr.mxu0 %v358
    %466 = vmatpush1.msra.mxu0 %v357
    %467 = vmatprep.subr.mxu0 %v354
    %468 = vmatpush1.msra.mxu0 %v353
    %469 = vmatprep.subr.mxu0 %v350
    %470 = vmatpush1.msra.mxu0 %v349
    %471 = vmatprep.subr.mxu0 %v346
    %472 = vmatpush1.msra.mxu0 %v345
    %473 = vmatprep.subr.mxu0 %v342
    %474 = vmatpush1.msra.mxu0 %v341
    %475 = vmatprep.subr.mxu0 %v338
    %476 = vmatpush1.msra.mxu0 %v337
    %477 = vmatprep.subr.mxu0 %v334
    %478 = vmatpush1.msra.mxu0 %v333
    %479 = vmatprep.subr.mxu0 %v330
    %480 = vmatpush1.msra.mxu0 %v329
    %481 = vmatprep.subr.mxu0 %v326
    %482 = vmatpush1.msra.mxu0 %v325
    %483 = vmatprep.subr.mxu0 %v322
    %484 = vmatpush1.msra.mxu0 %v321
    %485 = vmatprep.subr.mxu0 %v318
    %486 = vmatpush1.msra.mxu0 %v317
    %487 = vmatprep.subr.mxu0 %v314
    %488 = vmatpush1.msra.mxu0 %v313
    %489 = vmatprep.subr.mxu0 %v310
    %490 = vmatpush1.msra.mxu0 %v309
    %491 = vmatprep.subr.mxu0 %v434
    %492 = vmatpush2.msra.mxu0 %v433
    %493 = vmatprep.subr.mxu0 %v430
    %494 = vmatpush2.msra.mxu0 %v429
    %495 = vmatprep.subr.mxu0 %v426
    %496 = vmatpush2.msra.mxu0 %v425
    %497 = vmatprep.subr.mxu0 %v422
    %498 = vmatpush2.msra.mxu0 %v421
    %499 = vmatprep.subr.mxu0 %v418
    %500 = vmatpush2.msra.mxu0 %v417
    %501 = vmatprep.subr.mxu0 %v414
    %502 = vmatpush2.msra.mxu0 %v413
    %503 = vmatprep.subr.mxu0 %v410
    %504 = vmatpush2.msra.mxu0 %v409
    %505 = vmatprep.subr.mxu0 %v406
    %506 = vmatpush2.msra.mxu0 %v405
    %507 = vmatprep.subr.mxu0 %v402
    %508 = vmatpush2.msra.mxu0 %v401
    %509 = vmatprep.subr.mxu0 %v398
    %510 = vmatpush2.msra.mxu0 %v397
    %511 = vmatprep.subr.mxu0 %v394
    %512 = vmatpush2.msra.mxu0 %v393
    %513 = vmatprep.subr.mxu0 %v390
    %514 = vmatpush2.msra.mxu0 %v389
    %515 = vmatprep.subr.mxu0 %v386
    %516 = vmatpush2.msra.mxu0 %v385
    %517 = vmatprep.subr.mxu0 %v382
    %518 = vmatpush2.msra.mxu0 %v381
    %519 = vmatprep.subr.mxu0 %v378
    %520 = vmatpush2.msra.mxu0 %v377
    %521 = vmatprep.subr.mxu0 %v374
    %522 = vmatpush2.msra.mxu0 %v373
    %523 = vmatprep.mubr.f32.mxu0 %v308
    %524 = vmatmul.mubr.f32.gmra.mxu0 %v307
    %v525 = vpop.f32.mrf.mxu0
    %v526 = vadd.f32 %v442, %v525
    %v527 = vpop.f32.mrf.mxu0
    %v528 = vadd.f32 %v446, %v527
    %529 = vdwg.mxu0
    %530 = vmatprep.subr.mxu0 %v372
    %531 = vmatpush1.msra.mxu0 %v371
    %532 = vmatprep.subr.mxu0 %v368
    %533 = vmatpush1.msra.mxu0 %v367
    %534 = vmatprep.subr.mxu0 %v364
    %535 = vmatpush1.msra.mxu0 %v363
    %536 = vmatprep.subr.mxu0 %v360
    %537 = vmatpush1.msra.mxu0 %v359
    %538 = vmatprep.subr.mxu0 %v356
    %539 = vmatpush1.msra.mxu0 %v355
    %540 = vmatprep.subr.mxu0 %v352
    %541 = vmatpush1.msra.mxu0 %v351
    %542 = vmatprep.subr.mxu0 %v348
    %543 = vmatpush1.msra.mxu0 %v347
    %544 = vmatprep.subr.mxu0 %v344
    %545 = vmatpush1.msra.mxu0 %v343
    %546 = vmatprep.subr.mxu0 %v340
    %547 = vmatpush1.msra.mxu0 %v339
    %548 = vmatprep.subr.mxu0 %v336
    %549 = vmatpush1.msra.mxu0 %v335
    %550 = vmatprep.subr.mxu0 %v332
    %551 = vmatpush1.msra.mxu0 %v331
    %552 = vmatprep.subr.mxu0 %v328
    %553 = vmatpush1.msra.mxu0 %v327
    %554 = vmatprep.subr.mxu0 %v324
    %555 = vmatpush1.msra.mxu0 %v323
    %556 = vmatprep.subr.mxu0 %v320
    %557 = vmatpush1.msra.mxu0 %v319
    %558 = vmatprep.subr.mxu0 %v316
    %559 = vmatpush1.msra.mxu0 %v315
    %560 = vmatprep.subr.mxu0 %v312
    %561 = vmatpush1.msra.mxu0 %v311
    %562 = vmatprep.subr.mxu0 %v436
    %563 = vmatpush2.msra.mxu0 %v435
    %564 = vmatprep.subr.mxu0 %v432
    %565 = vmatpush2.msra.mxu0 %v431
    %566 = vmatprep.subr.mxu0 %v428
    %567 = vmatpush2.msra.mxu0 %v427
    %568 = vmatprep.subr.mxu0 %v424
    %569 = vmatpush2.msra.mxu0 %v423
    %570 = vmatprep.subr.mxu0 %v420
    %571 = vmatpush2.msra.mxu0 %v419
    %572 = vmatprep.subr.mxu0 %v416
    %573 = vmatpush2.msra.mxu0 %v415
    %574 = vmatprep.subr.mxu0 %v412
    %575 = vmatpush2.msra.mxu0 %v411
    %576 = vmatprep.subr.mxu0 %v408
    %577 = vmatpush2.msra.mxu0 %v407
    %578 = vmatprep.subr.mxu0 %v404
    %579 = vmatpush2.msra.mxu0 %v403
    %580 = vmatprep.subr.mxu0 %v400
    %581 = vmatpush2.msra.mxu0 %v399
    %582 = vmatprep.subr.mxu0 %v396
    %583 = vmatpush2.msra.mxu0 %v395
    %584 = vmatprep.subr.mxu0 %v392
    %585 = vmatpush2.msra.mxu0 %v391
    %586 = vmatprep.subr.mxu0 %v388
    %587 = vmatpush2.msra.mxu0 %v387
    %588 = vmatprep.subr.mxu0 %v384
    %589 = vmatpush2.msra.mxu0 %v383
    %590 = vmatprep.subr.mxu0 %v380
    %591 = vmatpush2.msra.mxu0 %v379
    %592 = vmatprep.subr.mxu0 %v376
    %593 = vmatpush2.msra.mxu0 %v375
    %594 = vmatprep.mubr.f32.mxu0 %v308
    %595 = vmatmul.mubr.f32.gmra.mxu0 %v307
    %v596 = vpop.f32.mrf.mxu0
    %v597 = vadd.f32 %v450, %v596
    %v598 = vpop.f32.mrf.mxu0
    %v599 = vadd.f32 %v454, %v598
    %600 = vdwg.mxu0
    %vm601 = vcmp.gt.f32.partialorder %v526, 0.0
    %vm602 = vcmp.gt.f32.partialorder %v528, 0.0
    %vm603 = vcmp.gt.f32.partialorder %v597, 0.0
    %vm604 = vcmp.gt.f32.partialorder %v599, 0.0
    %v605 = vmul.f32 %v526, 0.2
    %v606 = vmul.f32 %v528, 0.2
    %v607 = vmul.f32 %v597, 0.2
    %v608 = vmul.f32 %v599, 0.2
    %v609 = vsel %vm601, %v526, %v605
    %v610 = vsel %vm602, %v528, %v606
    %v611 = vsel %vm603, %v597, %v607
    %v612 = vsel %vm604, %v599, %v608
    %v613 = vld [vmem:[#allocation10] sm:$0xff]
    %v614 = vld [vmem:[#allocation10 + $0x8] sm:$0xff]
    %v615 = vld [vmem:[#allocation10 + $0x10] sm:$0xff]
    %v616 = vld [vmem:[#allocation10 + $0x18] sm:$0xff]
    %v617 = vld [vmem:[#allocation10 + $0x20] sm:$0xff]
    %v618 = vld [vmem:[#allocation10 + $0x28] sm:$0xff]
    %v619 = vld [vmem:[#allocation10 + $0x30] sm:$0xff]
    %v620 = vld [vmem:[#allocation10 + $0x38] sm:$0xff]
    %v621 = vld [vmem:[#allocation10 + $0x40] sm:$0xff]
    %v622 = vld [vmem:[#allocation10 + $0x48] sm:$0xff]
    %v623 = vld [vmem:[#allocation10 + $0x50] sm:$0xff]
    %v624 = vld [vmem:[#allocation10 + $0x58] sm:$0xff]
    %v625 = vld [vmem:[#allocation10 + $0x60] sm:$0xff]
    %v626 = vld [vmem:[#allocation10 + $0x68] sm:$0xff]
    %v627 = vld [vmem:[#allocation10 + $0x70] sm:$0xff]
    %v628 = vld [vmem:[#allocation10 + $0x78] sm:$0xff]
    %v629 = vld [vmem:[#allocation10 + $0x80] sm:$0xff]
    %v630 = vld [vmem:[#allocation10 + $0x88] sm:$0xff]
    %v631 = vld [vmem:[#allocation10 + $0x90] sm:$0xff]
    %v632 = vld [vmem:[#allocation10 + $0x98] sm:$0xff]
    %v633 = vld [vmem:[#allocation10 + $0xa0] sm:$0xff]
    %v634 = vld [vmem:[#allocation10 + $0xa8] sm:$0xff]
    %v635 = vld [vmem:[#allocation10 + $0xb0] sm:$0xff]
    %v636 = vld [vmem:[#allocation10 + $0xb8] sm:$0xff]
    %v637 = vld [vmem:[#allocation10 + $0xc0] sm:$0xff]
    %v638 = vld [vmem:[#allocation10 + $0xc8] sm:$0xff]
    %v639 = vld [vmem:[#allocation10 + $0xd0] sm:$0xff]
    %v640 = vld [vmem:[#allocation10 + $0xd8] sm:$0xff]
    %v641 = vld [vmem:[#allocation10 + $0xe0] sm:$0xff]
    %v642 = vld [vmem:[#allocation10 + $0xe8] sm:$0xff]
    %v643 = vld [vmem:[#allocation10 + $0xf0] sm:$0xff]
    %v644 = vld [vmem:[#allocation10 + $0xf8] sm:$0xff]
    %v645 = vld [vmem:[#allocation10 + $0x100] sm:$0xff]
    %v646 = vld [vmem:[#allocation10 + $0x108] sm:$0xff]
    %v647 = vld [vmem:[#allocation10 + $0x110] sm:$0xff]
    %v648 = vld [vmem:[#allocation10 + $0x118] sm:$0xff]
    %v649 = vld [vmem:[#allocation10 + $0x120] sm:$0xff]
    %v650 = vld [vmem:[#allocation10 + $0x128] sm:$0xff]
    %v651 = vld [vmem:[#allocation10 + $0x130] sm:$0xff]
    %v652 = vld [vmem:[#allocation10 + $0x138] sm:$0xff]
    %v653 = vld [vmem:[#allocation10 + $0x140] sm:$0xff]
    %v654 = vld [vmem:[#allocation10 + $0x148] sm:$0xff]
    %v655 = vld [vmem:[#allocation10 + $0x150] sm:$0xff]
    %v656 = vld [vmem:[#allocation10 + $0x158] sm:$0xff]
    %v657 = vld [vmem:[#allocation10 + $0x160] sm:$0xff]
    %v658 = vld [vmem:[#allocation10 + $0x168] sm:$0xff]
    %v659 = vld [vmem:[#allocation10 + $0x170] sm:$0xff]
    %v660 = vld [vmem:[#allocation10 + $0x178] sm:$0xff]
    %v661 = vld [vmem:[#allocation10 + $0x180] sm:$0xff]
    %v662 = vld [vmem:[#allocation10 + $0x188] sm:$0xff]
    %v663 = vld [vmem:[#allocation10 + $0x190] sm:$0xff]
    %v664 = vld [vmem:[#allocation10 + $0x198] sm:$0xff]
    %v665 = vld [vmem:[#allocation10 + $0x1a0] sm:$0xff]
    %v666 = vld [vmem:[#allocation10 + $0x1a8] sm:$0xff]
    %v667 = vld [vmem:[#allocation10 + $0x1b0] sm:$0xff]
    %v668 = vld [vmem:[#allocation10 + $0x1b8] sm:$0xff]
    %v669 = vld [vmem:[#allocation10 + $0x1c0] sm:$0xff]
    %v670 = vld [vmem:[#allocation10 + $0x1c8] sm:$0xff]
    %v671 = vld [vmem:[#allocation10 + $0x1d0] sm:$0xff]
    %v672 = vld [vmem:[#allocation10 + $0x1d8] sm:$0xff]
    %v673 = vld [vmem:[#allocation10 + $0x1e0] sm:$0xff]
    %v674 = vld [vmem:[#allocation10 + $0x1e8] sm:$0xff]
    %v675 = vld [vmem:[#allocation10 + $0x1f0] sm:$0xff]
    %v676 = vld [vmem:[#allocation10 + $0x1f8] sm:$0xff]
    %v677 = vld [vmem:[%s8] sm:$0x1]
    %v679 = vlaneseq
    %v680 = vshrl.u32 %v679, 7
    %v681 = vsub.s32 0, %v680
    %v682 = vrot.slane %v677, %v681
    %684 = vmatprep.subr.mxu0 0.0
    %685 = vmatpush1.msra.mxu0 %v628
    %686 = vmatprep.subr.mxu0 0.0
    %687 = vmatpush1.msra.mxu0 %v627
    %688 = vmatprep.subr.mxu0 0.0
    %689 = vmatpush1.msra.mxu0 %v626
    %690 = vmatprep.subr.mxu0 0.0
    %691 = vmatpush1.msra.mxu0 %v625
    %692 = vmatprep.subr.mxu0 0.0
    %693 = vmatpush1.msra.mxu0 %v624
    %694 = vmatprep.subr.mxu0 0.0
    %695 = vmatpush1.msra.mxu0 %v623
    %696 = vmatprep.subr.mxu0 0.0
    %697 = vmatpush1.msra.mxu0 %v622
    %698 = vmatprep.subr.mxu0 0.0
    %699 = vmatpush1.msra.mxu0 %v621
    %700 = vmatprep.subr.mxu0 0.0
    %701 = vmatpush1.msra.mxu0 %v620
    %702 = vmatprep.subr.mxu0 0.0
    %703 = vmatpush1.msra.mxu0 %v619
    %704 = vmatprep.subr.mxu0 0.0
    %705 = vmatpush1.msra.mxu0 %v618
    %706 = vmatprep.subr.mxu0 0.0
    %707 = vmatpush1.msra.mxu0 %v617
    %708 = vmatprep.subr.mxu0 0.0
    %709 = vmatpush1.msra.mxu0 %v616
    %710 = vmatprep.subr.mxu0 0.0
    %711 = vmatpush1.msra.mxu0 %v615
    %712 = vmatprep.subr.mxu0 0.0
    %713 = vmatpush1.msra.mxu0 %v614
    %714 = vmatprep.subr.mxu0 0.0
    %715 = vmatpush1.msra.mxu0 %v613
    %716 = vmatprep.subr.mxu0 0.0
    %717 = vmatpush2.msra.mxu0 %v644
    %718 = vmatprep.subr.mxu0 0.0
    %719 = vmatpush2.msra.mxu0 %v643
    %720 = vmatprep.subr.mxu0 0.0
    %721 = vmatpush2.msra.mxu0 %v642
    %722 = vmatprep.subr.mxu0 0.0
    %723 = vmatpush2.msra.mxu0 %v641
    %724 = vmatprep.subr.mxu0 0.0
    %725 = vmatpush2.msra.mxu0 %v640
    %726 = vmatprep.subr.mxu0 0.0
    %727 = vmatpush2.msra.mxu0 %v639
    %728 = vmatprep.subr.mxu0 0.0
    %729 = vmatpush2.msra.mxu0 %v638
    %730 = vmatprep.subr.mxu0 0.0
    %731 = vmatpush2.msra.mxu0 %v637
    %732 = vmatprep.subr.mxu0 0.0
    %733 = vmatpush2.msra.mxu0 %v636
    %734 = vmatprep.subr.mxu0 0.0
    %735 = vmatpush2.msra.mxu0 %v635
    %736 = vmatprep.subr.mxu0 0.0
    %737 = vmatpush2.msra.mxu0 %v634
    %738 = vmatprep.subr.mxu0 0.0
    %739 = vmatpush2.msra.mxu0 %v633
    %740 = vmatprep.subr.mxu0 0.0
    %741 = vmatpush2.msra.mxu0 %v632
    %742 = vmatprep.subr.mxu0 0.0
    %743 = vmatpush2.msra.mxu0 %v631
    %744 = vmatprep.subr.mxu0 0.0
    %745 = vmatpush2.msra.mxu0 %v630
    %746 = vmatprep.subr.mxu0 0.0
    %747 = vmatpush2.msra.mxu0 %v629
    %748 = vmatprep.mubr.f32.mxu0 %v610
    %749 = vmatmul.mubr.f32.gmra.mxu0 %v609
    %v750 = vpop.f32.mrf.mxu0
    %v751 = vadd.f32 %v682, %v750
    %v752 = vpop.f32.mrf.mxu0
    %753 = vdwg.mxu0
    %754 = vmatprep.subr.mxu0 0.0
    %755 = vmatpush1.msra.mxu0 %v660
    %756 = vmatprep.subr.mxu0 0.0
    %757 = vmatpush1.msra.mxu0 %v659
    %758 = vmatprep.subr.mxu0 0.0
    %759 = vmatpush1.msra.mxu0 %v658
    %760 = vmatprep.subr.mxu0 0.0
    %761 = vmatpush1.msra.mxu0 %v657
    %762 = vmatprep.subr.mxu0 0.0
    %763 = vmatpush1.msra.mxu0 %v656
    %764 = vmatprep.subr.mxu0 0.0
    %765 = vmatpush1.msra.mxu0 %v655
    %766 = vmatprep.subr.mxu0 0.0
    %767 = vmatpush1.msra.mxu0 %v654
    %768 = vmatprep.subr.mxu0 0.0
    %769 = vmatpush1.msra.mxu0 %v653
    %770 = vmatprep.subr.mxu0 0.0
    %771 = vmatpush1.msra.mxu0 %v652
    %772 = vmatprep.subr.mxu0 0.0
    %773 = vmatpush1.msra.mxu0 %v651
    %774 = vmatprep.subr.mxu0 0.0
    %775 = vmatpush1.msra.mxu0 %v650
    %776 = vmatprep.subr.mxu0 0.0
    %777 = vmatpush1.msra.mxu0 %v649
    %778 = vmatprep.subr.mxu0 0.0
    %779 = vmatpush1.msra.mxu0 %v648
    %780 = vmatprep.subr.mxu0 0.0
    %781 = vmatpush1.msra.mxu0 %v647
    %782 = vmatprep.subr.mxu0 0.0
    %783 = vmatpush1.msra.mxu0 %v646
    %784 = vmatprep.subr.mxu0 0.0
    %785 = vmatpush1.msra.mxu0 %v645
    %786 = vmatprep.subr.mxu0 0.0
    %787 = vmatpush2.msra.mxu0 %v676
    %788 = vmatprep.subr.mxu0 0.0
    %789 = vmatpush2.msra.mxu0 %v675
    %790 = vmatprep.subr.mxu0 0.0
    %791 = vmatpush2.msra.mxu0 %v674
    %792 = vmatprep.subr.mxu0 0.0
    %793 = vmatpush2.msra.mxu0 %v673
    %794 = vmatprep.subr.mxu0 0.0
    %795 = vmatpush2.msra.mxu0 %v672
    %796 = vmatprep.subr.mxu0 0.0
    %797 = vmatpush2.msra.mxu0 %v671
    %798 = vmatprep.subr.mxu0 0.0
    %799 = vmatpush2.msra.mxu0 %v670
    %800 = vmatprep.subr.mxu0 0.0
    %801 = vmatpush2.msra.mxu0 %v669
    %802 = vmatprep.subr.mxu0 0.0
    %803 = vmatpush2.msra.mxu0 %v668
    %804 = vmatprep.subr.mxu0 0.0
    %805 = vmatpush2.msra.mxu0 %v667
    %806 = vmatprep.subr.mxu0 0.0
    %807 = vmatpush2.msra.mxu0 %v666
    %808 = vmatprep.subr.mxu0 0.0
    %809 = vmatpush2.msra.mxu0 %v665
    %810 = vmatprep.subr.mxu0 0.0
    %811 = vmatpush2.msra.mxu0 %v664
    %812 = vmatprep.subr.mxu0 0.0
    %813 = vmatpush2.msra.mxu0 %v663
    %814 = vmatprep.subr.mxu0 0.0
    %815 = vmatpush2.msra.mxu0 %v662
    %816 = vmatprep.subr.mxu0 0.0
    %817 = vmatpush2.msra.mxu0 %v661
    %818 = vmatprep.mubr.f32.mxu0 %v612
    %819 = vmatmul.mubr.f32.gmra.mxu0 %v611
    %v820 = vpop.f32.mrf.mxu0
    %v821 = vadd.f32 %v751, %v820
    %v822 = vpop.f32.mrf.mxu0
    %823 = vdwg.mxu0
    %v824 = vtanh.pop %v821
    %825 = vst [vmem:[#allocation11] sm:$0xff] %v824
    // Predicated region
    $region58: #{tpu_custom_call.1} parent=1 // pred_check
      _
    $region59: #{tpu_custom_call.1} parent=1 // pred_check_branch
      %827 = sbr.rel (0) target = $region61
    $region60: #{tpu_custom_call.1} parent=1 // pred_region
      %s829 = ssub.s32 128, 128
      %830 = vsyncadd [#allocation4], %s829
      %s832 = sshll.u32 [#allocation11], 4
      %s833 = int_to_ptr.vmem [resolvable:$true] %s832
      %835 = dma.vmem_to_hbm [thread:$0]  %s833, 128, %s9, [#allocation4]
    $region61: #{tpu_custom_call.1} parent=1 // pred_fallthru
      _
    // Predicated region
    $region62: #{tpu_custom_call.1} parent=1 // pred_check
      _
    $region63: #{tpu_custom_call.1} parent=1 // pred_check_branch
      %837 = sbr.rel (0) target = $region65
    $region64: #{tpu_custom_call.1} parent=1 // pred_region
      %838 = dma.done [#allocation4], 128
    $region65: #{tpu_custom_call.1} parent=1 // pred_fallthru
      _
    %839 = vsyncpa [#allocation3], 1
    %840 = vsyncpa [#allocation6], 1
    %841 = vsyncpa [#allocation9], 1
    %842 = vsyncpa [#allocation4], 1

</llo_original>
